<compile_context>
chip_gen: v7x
topology: tpu7x:2x2x1
jax: 0.10.0
libtpu: 0.0.40
codegen_flags: <defaults>
</compile_context>

<pallas_src>
import math
from functools import partial

import jax
import jax.numpy as jnp
from jax import lax
from jax.experimental import pallas as pl
from jax.experimental.pallas import tpu as pltpu


# ----------------------------------------------------------------------------
# Tiling helpers
# ----------------------------------------------------------------------------
def _pick_tile(dim: int, target: int, align: int) -> int:
    """Largest tile <= target that divides `dim` and respects the (8,128) rule.

    Falls back to the full dimension (always legal: block == full dim) only when
    no aligned divisor exists.
    """
    if dim <= target:
        return dim
    for cand in range(target, 0, -1):
        if dim % cand == 0 and cand % align == 0:
            return cand
    # TODO(synk): pad + masked-tail path for dims with no aligned divisor.
    return dim


def _heads_per_group(h: int, d_k: int, target_lanes: int = 128) -> int:
    """Smallest divisor g of h with g*d_k >= 128 lanes (lane-dense blocks)."""
    for g in range(1, h + 1):
        if h % g == 0 and g * d_k >= target_lanes:
            return g
    return h


# ----------------------------------------------------------------------------
# Kernel 1: tiled linear layer  y = x @ w + b
# ----------------------------------------------------------------------------
def _linear_kernel(x_ref, w_ref, b_ref, o_ref, acc_ref):
    @pl.when(pl.program_id(2) == 0)
    def _():
        acc_ref[...] = jnp.zeros_like(acc_ref)

    acc_ref[...] += jnp.dot(
        x_ref[...], w_ref[...], preferred_element_type=jnp.float32
    )

    @pl.when(pl.program_id(2) == pl.num_programs(2) - 1)
    def _():
        o_ref[...] = (acc_ref[...] + b_ref[...].astype(jnp.float32)).astype(o_ref.dtype)


def linear(x2d, w, b, *, tm=512, tn=512, tk=256):
    """x2d: (M, K), w: (K, N), b: (N,) -> (M, N) = x2d @ w + b."""
    M, K = x2d.shape
    K2, N = w.shape
    assert K == K2
    tm = _pick_tile(M, tm, 8)     # second-to-last dim of x/out blocks
    tn = _pick_tile(N, tn, 128)   # last dim of w/out/bias blocks
    tk = _pick_tile(K, tk, 128)   # last dim of x block / second-to-last of w block
    b2d = b.reshape(1, N)

    return pl.pallas_call(
        _linear_kernel,
        out_shape=jax.ShapeDtypeStruct((M, N), x2d.dtype),
        grid_spec=pltpu.PrefetchScalarGridSpec(
            num_scalar_prefetch=0,
            grid=(M // tm, N // tn, K // tk),
            in_specs=[
                pl.BlockSpec((tm, tk), lambda i, j, k: (i, k)),
                pl.BlockSpec((tk, tn), lambda i, j, k: (k, j)),
                pl.BlockSpec((1, tn), lambda i, j, k: (0, j)),
            ],
            out_specs=pl.BlockSpec((tm, tn), lambda i, j, k: (i, j)),
            scratch_shapes=[pltpu.VMEM((tm, tn), jnp.float32)],
        ),
        compiler_params=pltpu.CompilerParams(
            dimension_semantics=("parallel", "parallel", "arbitrary")
        ),
    )(x2d, w, b2d)


# ----------------------------------------------------------------------------
# Kernel 2: head-aware flash attention (online softmax over kv tiles)
#
# q_arr / k_arr / v_arr may be the SAME fused projection array; per-head columns
# are selected purely through BlockSpec index_maps (no HBM transposes/slices).
# Output is written directly in (B, Sq, h*d_k) head-concatenated layout.
# ----------------------------------------------------------------------------
def _attn_kernel(q_ref, k_ref, v_ref, o_ref, m_sc, l_sc, acc_sc, *,
                 g, d_k, scale, exp_dtype):
    ki = pl.program_id(3)

    @pl.when(ki == 0)
    def _():
        m_sc[...] = jnp.full_like(m_sc, -jnp.inf)
        l_sc[...] = jnp.zeros_like(l_sc)
        acc_sc[...] = jnp.zeros_like(acc_sc)

    q = q_ref[0]  # (tq, g*d_k)
    k = k_ref[0]  # (tk, g*d_k)
    v = v_ref[0]  # (tk, g*d_k)

    for hd in range(g):  # static unroll over the head group
        col = slice(hd * d_k, (hd + 1) * d_k)
        q_h = q[:, col] * scale          # scale folded into the narrow q tile
        k_h = k[:, col]
        v_h = v[:, col]

        # q.k^T contracting the shared last dim (no explicit k transpose).
        s = lax.dot_general(
            q_h, k_h, (((1,), (1,)), ((), ())),
            preferred_element_type=jnp.float32,
        )  # (tq, tk)

        m_prev = m_sc[hd]                                   # (tq, 1)
        m_new = jnp.maximum(m_prev, s.max(axis=-1, keepdims=True))
        alpha = jnp.exp(m_prev - m_new)
        p = jnp.exp((s - m_new).astype(exp_dtype))          # (tq, tk)

        l_sc[hd] = alpha * l_sc[hd] + p.astype(jnp.float32).sum(axis=-1, keepdims=True)
        acc_sc[:, col] = alpha * acc_sc[:, col] + jnp.dot(
            p.astype(v_h.dtype), v_h, preferred_element_type=jnp.float32
        )
        m_sc[hd] = m_new

    @pl.when(ki == pl.num_programs(3) - 1)
    def _():
        outs = []
        for hd in range(g):
            col = slice(hd * d_k, (hd + 1) * d_k)
            inv = pl.reciprocal(l_sc[hd], approx=True)      # (tq, 1), EUP slot
            outs.append(acc_sc[:, col] * inv)
        # single lane-dense store of the whole (tq, g*d_k) block
        o_ref[0] = jnp.concatenate(outs, axis=-1).astype(o_ref.dtype)


def flash_attention(q_arr, k_arr, v_arr, *, h, d_k, g,
                    q_col=0, k_col=0, v_col=0, scale,
                    tq=128, tk=256, exp_dtype=jnp.float32):
    """q_arr: (B, Sq, *), k_arr/v_arr: (B, Sk, *).

    Head `i` of q lives at columns [q_col + i*d_k, q_col + (i+1)*d_k) of q_arr
    (same for k/v with k_col/v_col), which lets fused qkv / kv projections be
    consumed in place. Returns (B, Sq, h*d_k) with heads concatenated on the
    last dim (the layout the output projection expects).
    """
    B, Sq, _ = q_arr.shape
    _, Sk, _ = k_arr.shape
    D = h * d_k
    bw = g * d_k                     # lane width of every block
    assert h % g == 0
    assert q_col % bw == 0 and k_col % bw == 0 and v_col % bw == 0

    tq = _pick_tile(Sq, tq, 8)
    tk = _pick_tile(Sk, tk, 8)
    n_groups = h // g
    q_bi, k_bi, v_bi = q_col // bw, k_col // bw, v_col // bw

    kernel = partial(_attn_kernel, g=g, d_k=d_k, scale=scale, exp_dtype=exp_dtype)
    return pl.pallas_call(
        kernel,
        out_shape=jax.ShapeDtypeStruct((B, Sq, D), q_arr.dtype),
        grid_spec=pltpu.PrefetchScalarGridSpec(
            num_scalar_prefetch=0,
            grid=(B, n_groups, Sq // tq, Sk // tk),
            in_specs=[
                pl.BlockSpec((1, tq, bw), lambda b, gi, qi, ki: (b, qi, q_bi + gi)),
                pl.BlockSpec((1, tk, bw), lambda b, gi, qi, ki: (b, ki, k_bi + gi)),
                pl.BlockSpec((1, tk, bw), lambda b, gi, qi, ki: (b, ki, v_bi + gi)),
            ],
            out_specs=pl.BlockSpec((1, tq, bw), lambda b, gi, qi, ki: (b, qi, gi)),
            scratch_shapes=[
                pltpu.VMEM((g, tq, 1), jnp.float32),   # running max (per head)
                pltpu.VMEM((g, tq, 1), jnp.float32),   # running denom (per head)
                pltpu.VMEM((tq, bw), jnp.float32),     # running numerator
            ],
        ),
        compiler_params=pltpu.CompilerParams(
            dimension_semantics=("parallel", "parallel", "parallel", "arbitrary")
        ),
    )(q_arr, k_arr, v_arr)


# ----------------------------------------------------------------------------
# MultiHeadAttention forward (no HBM transposes; fused projections where legal)
# ----------------------------------------------------------------------------
def multi_head_attention(query, key, value, params, *, h):
    """query/key/value: (B, S, D). params: wq,wk,wv,wo (D,D) and bq,bk,bv,bo (D,)."""
    B, Sq, D = query.shape
    _, Sk, _ = key.shape
    assert D % h == 0
    d_k = D // h
    scale = 1.0 / math.sqrt(d_k)

    g = _heads_per_group(h, d_k)
    fuse_ok = (g * d_k) % 128 == 0   # fused layouts need 128-aligned block lanes

    wq, wk, wv, wo = params["wq"], params["wk"], params["wv"], params["wo"]
    bq, bk, bv, bo = params["bq"], params["bk"], params["bv"], params["bo"]

    if fuse_ok and (query is key) and (key is value):
        # Self-attention: one (D, 3D) projection; attention reads head windows
        # of the fused qkv directly (q at col 0, k at col D, v at col 2D).
        w_qkv = jnp.concatenate([wq, wk, wv], axis=1)
        b_qkv = jnp.concatenate([bq, bk, bv], axis=0)
        qkv = linear(query.reshape(B * Sq, D), w_qkv, b_qkv).reshape(B, Sq, 3 * D)
        ctx = flash_attention(qkv, qkv, qkv, h=h, d_k=d_k, g=g,
                              q_col=0, k_col=D, v_col=2 * D, scale=scale)
    elif fuse_ok and (key is value):
        # Cross-attention: separate q projection, fused (D, 2D) k|v projection.
        q_p = linear(query.reshape(B * Sq, D), wq, bq).reshape(B, Sq, D)
        w_kv = jnp.concatenate([wk, wv], axis=1)
        b_kv = jnp.concatenate([bk, bv], axis=0)
        kv = linear(key.reshape(B * Sk, D), w_kv, b_kv).reshape(B, Sk, 2 * D)
        ctx = flash_attention(q_p, kv, kv, h=h, d_k=d_k, g=g,
                              q_col=0, k_col=0, v_col=D, scale=scale)
    else:
        # Fallback (D not 128-aligned or fully distinct q/k/v): separate
        # projections; full-D blocks stay legal via the "block == full dim" rule.
        g = h
        q_p = linear(query.reshape(B * Sq, D), wq, bq).reshape(B, Sq, D)
        k_p = linear(key.reshape(B * Sk, D), wk, bk).reshape(B, Sk, D)
        v_p = linear(value.reshape(B * Sk, D), wv, bv).reshape(B, Sk, D)
        ctx = flash_attention(q_p, k_p, v_p, h=h, d_k=d_k, g=g,
                              q_col=0, k_col=0, v_col=0, scale=scale)

    # ctx is already (B, Sq, D) with heads concatenated along the last dim,
    # exactly the layout the PyTorch module feeds to the output projection.
    return linear(ctx.reshape(B * Sq, D), wo, bo).reshape(B, Sq, D)


# ----------------------------------------------------------------------------
# Pure-JAX reference (mirrors the PyTorch module with mask=None, eval dropout)
# ----------------------------------------------------------------------------
def mha_reference(query, key, value, params, *, h):
    B, Sq, D = query.shape
    d_k = D // h

    def proj(x, w, b):
        return x @ w + b

    def split(t):
        return t.reshape(t.shape[0], -1, h, d_k).transpose(0, 2, 1, 3)

    q = split(proj(query, params["wq"], params["bq"]))
    k = split(proj(key, params["wk"], params["bk"]))
    v = split(proj(value, params["wv"], params["bv"]))

    scores = jnp.einsum("bhqd,bhkd->bhqk", q, k) / math.sqrt(d_k)
    p = jax.nn.softmax(scores, axis=-1)
    ctx = jnp.einsum("bhqk,bhkd->bhqd", p, v)
    ctx = ctx.transpose(0, 2, 1, 3).reshape(B, Sq, D)
    return ctx @ params["wo"] + params["bo"]


def _make_params(key, d_model):
    ks = jax.random.split(key, 8)

    def w_init(k):
        return jax.random.normal(k, (d_model, d_model), dtype=jnp.float32) / math.sqrt(d_model)

    def b_init(k):
        return jax.random.normal(k, (d_model,), dtype=jnp.float32) * 0.02

    return {
        "wq": w_init(ks[0]), "bq": b_init(ks[1]),
        "wk": w_init(ks[2]), "bk": b_init(ks[3]),
        "wv": w_init(ks[4]), "bv": b_init(ks[5]),
        "wo": w_init(ks[6]), "bo": b_init(ks[7]),
    }


if __name__ == "__main__":
    # ---- primary check: self-attention, fused-qkv + lane-dense path ----
    B, S, D, H = 2, 8, 128, 4   # d_k = 32, head group g = 4 -> 128-lane blocks
    k0, k1 = jax.random.split(jax.random.PRNGKey(0), 2)
    x = jax.random.normal(k0, (B, S, D), dtype=jnp.float32)
    params = _make_params(k1, D)

    out = multi_head_attention(x, x, x, params, h=H)
    out = jax.block_until_ready(out)
    ref = mha_reference(x, x, x, params, h=H)
    assert out.shape == (B, S, D)
    assert jnp.allclose(out, ref, atol=1e-2, rtol=1e-2), "fused self-attention mismatch"

    # ---- secondary check: tiny d_model fallback path (full-D blocks) ----
    B2, S2, D2, H2 = 2, 8, 32, 4   # d_k = 8 -> non-128-aligned, separate projections
    k2, k3, k4 = jax.random.split(jax.random.PRNGKey(1), 3)
    xq = jax.random.normal(k2, (B2, S2, D2), dtype=jnp.float32)
    xkv = jax.random.normal(k3, (B2, S2, D2), dtype=jnp.float32)
    params2 = _make_params(k4, D2)

    out2 = jax.block_until_ready(multi_head_attention(xq, xkv, xkv, params2, h=H2))
    ref2 = mha_reference(xq, xkv, xkv, params2, h=H2)
    assert out2.shape == (B2, S2, D2)
    assert jnp.allclose(out2, ref2, atol=1e-2, rtol=1e-2), "fallback cross-attention mismatch"

    print("KERNEL_OK")
</pallas_src>

<mosaic_0001>
module attributes {stable_mosaic.version = 11 : i64} {
  func.func @_linear_kernel(%arg0: i32, %arg1: i32, %arg2: i32, %arg3: memref<16x128xf32, #tpu.memory_space<vmem>>, %arg4: memref<128x384xf32, #tpu.memory_space<vmem>>, %arg5: memref<1x384xf32, #tpu.memory_space<vmem>>, %arg6: memref<16x384xf32, #tpu.memory_space<vmem>>, %arg7: memref<16x384xf32, #tpu.memory_space<vmem>>) attributes {dimension_semantics = [#tpu.dimension_semantics<parallel>, #tpu.dimension_semantics<parallel>, #tpu.dimension_semantics<arbitrary>], iteration_bounds = array<i64: 1, 1, 1>, scalar_prefetch = 0 : i64, scratch_operands = 1 : i64, tpu.core_type = #tpu.core_type<tc>, window_params = [{transform_indices = @transform_0, window_bounds = array<i64: 16, 128>}, {transform_indices = @transform_1, window_bounds = array<i64: 128, 384>}, {transform_indices = @transform_2, window_bounds = array<i64: 1, 384>}, {transform_indices = @transform_3, window_bounds = array<i64: 16, 384>}]} {
    %c0_i32 = arith.constant 0 : i32
    %0 = arith.cmpi eq, %arg2, %c0_i32 : i32
    %1 = arith.extui %0 : i1 to i32
    %c0_i32_0 = arith.constant 0 : i32
    %2 = arith.cmpi ne, %1, %c0_i32_0 : i32
    scf.if %2 {
      %cst_10 = arith.constant 0.000000e+00 : f32
      %12 = vector.broadcast %cst_10 : f32 to vector<16x384xf32>
      %c0_11 = arith.constant 0 : index
      %c0_12 = arith.constant 0 : index
      %13 = vector.load %arg7[%c0_11, %c0_12] : memref<16x384xf32, #tpu.memory_space<vmem>>, vector<16x384xf32>
      tpu.vector_store %arg7[%c0_11, %c0_12], %12 {strides = array<i32>} : memref<16x384xf32, #tpu.memory_space<vmem>>, vector<16x384xf32>,
    } else {
    }
    %c0 = arith.constant 0 : index
    %c0_1 = arith.constant 0 : index
    %3 = vector.load %arg7[%c0, %c0_1] : memref<16x384xf32, #tpu.memory_space<vmem>>, vector<16x384xf32>
    %c0_2 = arith.constant 0 : index
    %c0_3 = arith.constant 0 : index
    %4 = vector.load %arg3[%c0_2, %c0_3] : memref<16x128xf32, #tpu.memory_space<vmem>>, vector<16x128xf32>
    %c0_4 = arith.constant 0 : index
    %c0_5 = arith.constant 0 : index
    %5 = vector.load %arg4[%c0_4, %c0_5] : memref<128x384xf32, #tpu.memory_space<vmem>>, vector<128x384xf32>
    %cst = arith.constant dense<0.000000e+00> : vector<16x384xf32>
    %6 = tpu.matmul %4, %5, %cst {dimension_numbers = #tpu.dot_dimension_numbers<[1], [0], [0], [1], [0, 0, 1, 1], [], []>} : vector<16x128xf32>, vector<128x384xf32>, vector<16x384xf32> -> vector<16x384xf32>
    %7 = arith.addf %3, %6 : vector<16x384xf32>
    %c0_6 = arith.constant 0 : index
    %c0_7 = arith.constant 0 : index
    %8 = vector.load %arg7[%c0_6, %c0_7] : memref<16x384xf32, #tpu.memory_space<vmem>>, vector<16x384xf32>
    tpu.vector_store %arg7[%c0_6, %c0_7], %7 {strides = array<i32>} : memref<16x384xf32, #tpu.memory_space<vmem>>, vector<16x384xf32>,
    %c0_i32_8 = arith.constant 0 : i32
    %9 = arith.cmpi eq, %arg2, %c0_i32_8 : i32
    %10 = arith.extui %9 : i1 to i32
    %c0_i32_9 = arith.constant 0 : i32
    %11 = arith.cmpi ne, %10, %c0_i32_9 : i32
    scf.if %11 {
      %c0_10 = arith.constant 0 : index
      %c0_11 = arith.constant 0 : index
      %12 = vector.load %arg7[%c0_10, %c0_11] : memref<16x384xf32, #tpu.memory_space<vmem>>, vector<16x384xf32>
      %c0_12 = arith.constant 0 : index
      %c0_13 = arith.constant 0 : index
      %13 = vector.load %arg5[%c0_12, %c0_13] : memref<1x384xf32, #tpu.memory_space<vmem>>, vector<1x384xf32>
      %14 = vector.broadcast %13 : vector<1x384xf32> to vector<16x384xf32>
      %15 = arith.addf %12, %14 : vector<16x384xf32>
      %c0_14 = arith.constant 0 : index
      %c0_15 = arith.constant 0 : index
      %16 = vector.load %arg6[%c0_14, %c0_15] : memref<16x384xf32, #tpu.memory_space<vmem>>, vector<16x384xf32>
      tpu.vector_store %arg6[%c0_14, %c0_15], %15 {strides = array<i32>} : memref<16x384xf32, #tpu.memory_space<vmem>>, vector<16x384xf32>,
    } else {
    }
    return
  }
  func.func @transform_0(%arg0: i32, %arg1: i32, %arg2: i32) -> (i32, i32) {
    %c0_i32 = arith.constant 0 : i32
    return %arg0, %arg2 : i32, i32
  }
  func.func @transform_1(%arg0: i32, %arg1: i32, %arg2: i32) -> (i32, i32) {
    %c0_i32 = arith.constant 0 : i32
    return %arg2, %arg1 : i32, i32
  }
  func.func @transform_2(%arg0: i32, %arg1: i32, %arg2: i32) -> (i32, i32) {
    %c0_i32 = arith.constant 0 : i32
    %c0_i32_0 = arith.constant 0 : i32
    return %c0_i32, %arg1 : i32, i32
  }
  func.func @transform_3(%arg0: i32, %arg1: i32, %arg2: i32) -> (i32, i32) {
    %c0_i32 = arith.constant 0 : i32
    return %arg0, %arg1 : i32, i32
  }
}

</mosaic_0001>

<llo_original>
// kernel: tpu_custom_call.1
$region0: #{tpu_custom_call.1}
  #allocation0 [shape = 'u32[]', space=smem, size = 0x4, offset = 0x4, fixed_abs, tag = 'smem constant byte address 0x4 - core index']
  #allocation1 [shape = 'u32[144,128]{1,0:T(1,128)}', space=vmem, size = 0x12000, scoped, tag = 'internal scratch']
  #allocation2 [shape = 'f32[16,384]{1,0:T(8,128)}', space=vmem, size = 0x6000, scoped, tag = 'scratch operand']
  %s0 = inlined_call_operand.hbm [shape: f32[16,128], index: 0, kind: input, shape index: {}]
  %s1 = inlined_call_operand.hbm [shape: f32[128,384], index: 1, kind: input, shape index: {}]
  %s2 = inlined_call_operand.vmem [shape: f32[1,384], index: 2, kind: input, shape index: {}]
  %s3 = inlined_call_operand.hbm [shape: f32[16,384], index: 3, kind: output, shape index: {}]
  %s4 = sld [smem:[#allocation0]]
  $region38: #{tpu_custom_call.1} parent=0
    _
  %s6 = ssub.s32 1, %s4
  %s7 = scalar_select 0, %s6, %s4
  $region1: #{tpu_custom_call.1} parent=0
    #allocation3 [shape = 'u8[8192]{0}', space=vmem, size = 0x2000, scoped, tag = 'input window, operand 0, single buffered']
    #allocation4 [shape = 's32[1]{0}', space=sflag, size = 0x4, scoped, tag = 'scoped memory for tpu_custom_call.1']
    #allocation5 [shape = 's32[1]{0}', space=sflag, size = 0x4, scoped, tag = 'scoped memory for tpu_custom_call.1']
    #allocation6 [shape = 'u8[196608]{0}', space=vmem, size = 0x30000, scoped, tag = 'input window, operand 1, single buffered']
    #allocation7 [shape = 's32[1]{0}', space=sflag, size = 0x4, scoped, tag = 'scoped memory for tpu_custom_call.1']
    #allocation8 [shape = 'u8[24576]{0}', space=vmem, size = 0x6000, scoped, tag = 'output window, operand 0, single buffered']
    %8 = vsyncpa [#allocation4], 0
    %9 = vsyncpa [#allocation7], 0
    %10 = vsyncpa [#allocation5], 0
    // Predicated region
    $region2: #{tpu_custom_call.1} parent=1 // pred_check
      _
    $region3: #{tpu_custom_call.1} parent=1 // pred_check_branch
      %12 = sbr.rel (0) target = $region5
    $region4: #{tpu_custom_call.1} parent=1 // pred_region
      %s14 = ssub.s32 256, 256
      %15 = vsyncadd [#allocation4], %s14
      %s16 = sshll.u32 [#allocation3], 4
      %s17 = int_to_ptr.vmem [resolvable:$true] %s16
      %22 = dma.hbm_to_vmem [thread:$0]  %s0, 256, %s17, [#allocation4], 128, 128, 8
    $region5: #{tpu_custom_call.1} parent=1 // pred_fallthru
      _
    // Predicated region
    $region6: #{tpu_custom_call.1} parent=1 // pred_check
      _
    $region7: #{tpu_custom_call.1} parent=1 // pred_check_branch
      %24 = sbr.rel (0) target = $region9
    $region8: #{tpu_custom_call.1} parent=1 // pred_region
      %s26 = ssub.s32 6144, 6144
      %27 = vsyncadd [#allocation7], %s26
      %s28 = sshll.u32 [#allocation6], 4
      %s29 = int_to_ptr.vmem [resolvable:$true] %s28
      %34 = dma.hbm_to_vmem [thread:$0]  %s1, 6144, %s29, [#allocation7], 384, 384, 24
    $region9: #{tpu_custom_call.1} parent=1 // pred_fallthru
      _
    // Predicated region
    $region10: #{tpu_custom_call.1} parent=1 // pred_check
      _
    $region11: #{tpu_custom_call.1} parent=1 // pred_check_branch
      %36 = sbr.rel (0) target = $region13
    $region12: #{tpu_custom_call.1} parent=1 // pred_region
      _
    $region13: #{tpu_custom_call.1} parent=1 // pred_fallthru
      _
    // Predicated region
    $region14: #{tpu_custom_call.1} parent=1 // pred_check
      _
    $region15: #{tpu_custom_call.1} parent=1 // pred_check_branch
      %38 = sbr.rel (0) target = $region17
    $region16: #{tpu_custom_call.1} parent=1 // pred_region
      %39 = dma.done [#allocation4], 256
    $region17: #{tpu_custom_call.1} parent=1 // pred_fallthru
      _
    // Predicated region
    $region18: #{tpu_custom_call.1} parent=1 // pred_check
      _
    $region19: #{tpu_custom_call.1} parent=1 // pred_check_branch
      %41 = sbr.rel (0) target = $region21
    $region20: #{tpu_custom_call.1} parent=1 // pred_region
      %42 = dma.done [#allocation7], 6144
    $region21: #{tpu_custom_call.1} parent=1 // pred_fallthru
      _
    %p43 = scmp.eq.s32.totalorder 0, 0
    // Predicated region
    $region22: #{tpu_custom_call.1} parent=1 // pred_check
      %p44 = pneg %p43
    $region23: #{tpu_custom_call.1} parent=1 // pred_check_branch
      %46 = sbr.rel (%p44) target = $region25
    $region24: #{tpu_custom_call.1} parent=1 // pred_region
      %47 = vst [vmem:[#allocation2] sm:$0xff] 0.0
      %48 = vst [vmem:[#allocation2 + $0x8] sm:$0xff] 0.0
      %49 = vst [vmem:[#allocation2 + $0x10] sm:$0xff] 0.0
      %50 = vst [vmem:[#allocation2 + $0x18] sm:$0xff] 0.0
      %51 = vst [vmem:[#allocation2 + $0x20] sm:$0xff] 0.0
      %52 = vst [vmem:[#allocation2 + $0x28] sm:$0xff] 0.0
    $region25: #{tpu_custom_call.1} parent=1 // pred_fallthru
      _
    %v53 = vld [vmem:[#allocation2] sm:$0xff]
    %v54 = vld [vmem:[#allocation2 + $0x8] sm:$0xff]
    %v55 = vld [vmem:[#allocation2 + $0x10] sm:$0xff]
    %v56 = vld [vmem:[#allocation2 + $0x18] sm:$0xff]
    %v57 = vld [vmem:[#allocation2 + $0x20] sm:$0xff]
    %v58 = vld [vmem:[#allocation2 + $0x28] sm:$0xff]
    %v59 = vld [vmem:[#allocation3] sm:$0xff]
    %v60 = vld [vmem:[#allocation3 + $0x8] sm:$0xff]
    %v61 = vld [vmem:[#allocation6] sm:$0xff]
    %v62 = vld [vmem:[#allocation6 + $0x8] sm:$0xff]
    %v63 = vld [vmem:[#allocation6 + $0x10] sm:$0xff]
    %v64 = vld [vmem:[#allocation6 + $0x18] sm:$0xff]
    %v65 = vld [vmem:[#allocation6 + $0x20] sm:$0xff]
    %v66 = vld [vmem:[#allocation6 + $0x28] sm:$0xff]
    %v67 = vld [vmem:[#allocation6 + $0x30] sm:$0xff]
    %v68 = vld [vmem:[#allocation6 + $0x38] sm:$0xff]
    %v69 = vld [vmem:[#allocation6 + $0x40] sm:$0xff]
    %v70 = vld [vmem:[#allocation6 + $0x48] sm:$0xff]
    %v71 = vld [vmem:[#allocation6 + $0x50] sm:$0xff]
    %v72 = vld [vmem:[#allocation6 + $0x58] sm:$0xff]
    %v73 = vld [vmem:[#allocation6 + $0x60] sm:$0xff]
    %v74 = vld [vmem:[#allocation6 + $0x68] sm:$0xff]
    %v75 = vld [vmem:[#allocation6 + $0x70] sm:$0xff]
    %v76 = vld [vmem:[#allocation6 + $0x78] sm:$0xff]
    %v77 = vld [vmem:[#allocation6 + $0x80] sm:$0xff]
    %v78 = vld [vmem:[#allocation6 + $0x88] sm:$0xff]
    %v79 = vld [vmem:[#allocation6 + $0x90] sm:$0xff]
    %v80 = vld [vmem:[#allocation6 + $0x98] sm:$0xff]
    %v81 = vld [vmem:[#allocation6 + $0xa0] sm:$0xff]
    %v82 = vld [vmem:[#allocation6 + $0xa8] sm:$0xff]
    %v83 = vld [vmem:[#allocation6 + $0xb0] sm:$0xff]
    %v84 = vld [vmem:[#allocation6 + $0xb8] sm:$0xff]
    %v85 = vld [vmem:[#allocation6 + $0xc0] sm:$0xff]
    %v86 = vld [vmem:[#allocation6 + $0xc8] sm:$0xff]
    %v87 = vld [vmem:[#allocation6 + $0xd0] sm:$0xff]
    %v88 = vld [vmem:[#allocation6 + $0xd8] sm:$0xff]
    %v89 = vld [vmem:[#allocation6 + $0xe0] sm:$0xff]
    %v90 = vld [vmem:[#allocation6 + $0xe8] sm:$0xff]
    %v91 = vld [vmem:[#allocation6 + $0xf0] sm:$0xff]
    %v92 = vld [vmem:[#allocation6 + $0xf8] sm:$0xff]
    %v93 = vld [vmem:[#allocation6 + $0x100] sm:$0xff]
    %v94 = vld [vmem:[#allocation6 + $0x108] sm:$0xff]
    %v95 = vld [vmem:[#allocation6 + $0x110] sm:$0xff]
    %v96 = vld [vmem:[#allocation6 + $0x118] sm:$0xff]
    %v97 = vld [vmem:[#allocation6 + $0x120] sm:$0xff]
    %v98 = vld [vmem:[#allocation6 + $0x128] sm:$0xff]
    %v99 = vld [vmem:[#allocation6 + $0x130] sm:$0xff]
    %v100 = vld [vmem:[#allocation6 + $0x138] sm:$0xff]
    %v101 = vld [vmem:[#allocation6 + $0x140] sm:$0xff]
    %v102 = vld [vmem:[#allocation6 + $0x148] sm:$0xff]
    %v103 = vld [vmem:[#allocation6 + $0x150] sm:$0xff]
    %v104 = vld [vmem:[#allocation6 + $0x158] sm:$0xff]
    %v105 = vld [vmem:[#allocation6 + $0x160] sm:$0xff]
    %v106 = vld [vmem:[#allocation6 + $0x168] sm:$0xff]
    %v107 = vld [vmem:[#allocation6 + $0x170] sm:$0xff]
    %v108 = vld [vmem:[#allocation6 + $0x178] sm:$0xff]
    %109 = vmatprep.subr.mxu0 %v62
    %110 = vmatpush1.msra.mxu0 %v61
    %111 = vmatprep.subr.mxu0 %v65
    %112 = vmatpush1.msra.mxu0 %v64
    %113 = vmatprep.subr.mxu0 %v68
    %114 = vmatpush1.msra.mxu0 %v67
    %115 = vmatprep.subr.mxu0 %v71
    %116 = vmatpush1.msra.mxu0 %v70
    %117 = vmatprep.subr.mxu0 %v74
    %118 = vmatpush1.msra.mxu0 %v73
    %119 = vmatprep.subr.mxu0 %v77
    %120 = vmatpush1.msra.mxu0 %v76
    %121 = vmatprep.subr.mxu0 %v80
    %122 = vmatpush1.msra.mxu0 %v79
    %123 = vmatprep.subr.mxu0 %v83
    %124 = vmatpush1.msra.mxu0 %v82
    %125 = vmatprep.subr.mxu0 %v86
    %126 = vmatpush1.msra.mxu0 %v85
    %127 = vmatprep.subr.mxu0 %v89
    %128 = vmatpush1.msra.mxu0 %v88
    %129 = vmatprep.subr.mxu0 %v92
    %130 = vmatpush1.msra.mxu0 %v91
    %131 = vmatprep.subr.mxu0 %v95
    %132 = vmatpush1.msra.mxu0 %v94
    %133 = vmatprep.subr.mxu0 %v98
    %134 = vmatpush1.msra.mxu0 %v97
    %135 = vmatprep.subr.mxu0 %v101
    %136 = vmatpush1.msra.mxu0 %v100
    %137 = vmatprep.subr.mxu0 %v104
    %138 = vmatpush1.msra.mxu0 %v103
    %139 = vmatprep.subr.mxu0 %v107
    %140 = vmatpush1.msra.mxu0 %v106
    %141 = vmatprep.subr.mxu0 0.0
    %142 = vmatpush1.msra.mxu0 0.0
    %143 = vmatprep.subr.mxu0 0.0
    %144 = vmatpush1.msra.mxu0 0.0
    %145 = vmatprep.subr.mxu0 0.0
    %146 = vmatpush1.msra.mxu0 0.0
    %147 = vmatprep.subr.mxu0 0.0
    %148 = vmatpush1.msra.mxu0 0.0
    %149 = vmatprep.subr.mxu0 0.0
    %150 = vmatpush1.msra.mxu0 0.0
    %151 = vmatprep.subr.mxu0 0.0
    %152 = vmatpush1.msra.mxu0 0.0
    %153 = vmatprep.subr.mxu0 0.0
    %154 = vmatpush1.msra.mxu0 0.0
    %155 = vmatprep.subr.mxu0 0.0
    %156 = vmatpush1.msra.mxu0 0.0
    %157 = vmatprep.subr.mxu0 0.0
    %158 = vmatpush1.msra.mxu0 0.0
    %159 = vmatprep.subr.mxu0 0.0
    %160 = vmatpush1.msra.mxu0 0.0
    %161 = vmatprep.subr.mxu0 0.0
    %162 = vmatpush1.msra.mxu0 0.0
    %163 = vmatprep.subr.mxu0 0.0
    %164 = vmatpush1.msra.mxu0 0.0
    %165 = vmatprep.subr.mxu0 0.0
    %166 = vmatpush1.msra.mxu0 0.0
    %167 = vmatprep.subr.mxu0 0.0
    %168 = vmatpush1.msra.mxu0 0.0
    %169 = vmatprep.subr.mxu0 0.0
    %170 = vmatpush1.msra.mxu0 0.0
    %171 = vmatprep.subr.mxu0 0.0
    %172 = vmatpush1.msra.mxu0 0.0
    %173 = vmatprep.mubr.f32.mxu0 0.0
    %174 = vmatmul.mubr.f32.gmra.mrb[0].mxu0 %v59
    %v175 = vpop.f32.mrb[0].mxu0
    %v176 = vadd.f32 0.0, %v175
    %v177 = vpop.f32.mrb[0].mxu0
    %v178 = vadd.f32 0.0, %v177
    %179 = vmatprep.mubr.f32.mxu0 0.0
    %180 = vmatmul.mubr.f32.gmra.mrb[0].mxu0 %v60
    %v181 = vpop.f32.mrb[0].mxu0
    %v182 = vadd.f32 0.0, %v181
    %v183 = vpop.f32.mrb[0].mxu0
    %v184 = vadd.f32 0.0, %v183
    %185 = vdwg.mxu0
    %186 = vmatprep.subr.mxu0 0.0
    %187 = vmatpush1.msra.mxu0 %v63
    %188 = vmatprep.subr.mxu0 0.0
    %189 = vmatpush1.msra.mxu0 %v66
    %190 = vmatprep.subr.mxu0 0.0
    %191 = vmatpush1.msra.mxu0 %v69
    %192 = vmatprep.subr.mxu0 0.0
    %193 = vmatpush1.msra.mxu0 %v72
    %194 = vmatprep.subr.mxu0 0.0
    %195 = vmatpush1.msra.mxu0 %v75
    %196 = vmatprep.subr.mxu0 0.0
    %197 = vmatpush1.msra.mxu0 %v78
    %198 = vmatprep.subr.mxu0 0.0
    %199 = vmatpush1.msra.mxu0 %v81
    %200 = vmatprep.subr.mxu0 0.0
    %201 = vmatpush1.msra.mxu0 %v84
    %202 = vmatprep.subr.mxu0 0.0
    %203 = vmatpush1.msra.mxu0 %v87
    %204 = vmatprep.subr.mxu0 0.0
    %205 = vmatpush1.msra.mxu0 %v90
    %206 = vmatprep.subr.mxu0 0.0
    %207 = vmatpush1.msra.mxu0 %v93
    %208 = vmatprep.subr.mxu0 0.0
    %209 = vmatpush1.msra.mxu0 %v96
    %210 = vmatprep.subr.mxu0 0.0
    %211 = vmatpush1.msra.mxu0 %v99
    %212 = vmatprep.subr.mxu0 0.0
    %213 = vmatpush1.msra.mxu0 %v102
    %214 = vmatprep.subr.mxu0 0.0
    %215 = vmatpush1.msra.mxu0 %v105
    %216 = vmatprep.subr.mxu0 0.0
    %217 = vmatpush1.msra.mxu0 %v108
    %218 = vmatprep.subr.mxu0 0.0
    %219 = vmatpush1.msra.mxu0 0.0
    %220 = vmatprep.subr.mxu0 0.0
    %221 = vmatpush1.msra.mxu0 0.0
    %222 = vmatprep.subr.mxu0 0.0
    %223 = vmatpush1.msra.mxu0 0.0
    %224 = vmatprep.subr.mxu0 0.0
    %225 = vmatpush1.msra.mxu0 0.0
    %226 = vmatprep.subr.mxu0 0.0
    %227 = vmatpush1.msra.mxu0 0.0
    %228 = vmatprep.subr.mxu0 0.0
    %229 = vmatpush1.msra.mxu0 0.0
    %230 = vmatprep.subr.mxu0 0.0
    %231 = vmatpush1.msra.mxu0 0.0
    %232 = vmatprep.subr.mxu0 0.0
    %233 = vmatpush1.msra.mxu0 0.0
    %234 = vmatprep.subr.mxu0 0.0
    %235 = vmatpush1.msra.mxu0 0.0
    %236 = vmatprep.subr.mxu0 0.0
    %237 = vmatpush1.msra.mxu0 0.0
    %238 = vmatprep.subr.mxu0 0.0
    %239 = vmatpush1.msra.mxu0 0.0
    %240 = vmatprep.subr.mxu0 0.0
    %241 = vmatpush1.msra.mxu0 0.0
    %242 = vmatprep.subr.mxu0 0.0
    %243 = vmatpush1.msra.mxu0 0.0
    %244 = vmatprep.subr.mxu0 0.0
    %245 = vmatpush1.msra.mxu0 0.0
    %246 = vmatprep.subr.mxu0 0.0
    %247 = vmatpush1.msra.mxu0 0.0
    %248 = vmatprep.subr.mxu0 0.0
    %249 = vmatpush1.msra.mxu0 0.0
    %250 = vmatprep.mubr.f32.mxu0 0.0
    %251 = vmatmul.mubr.f32.gmra.mrb[0].mxu0 %v59
    %v252 = vpop.f32.mrb[0].mxu0
    %v253 = vadd.f32 0.0, %v252
    %v254 = vpop.f32.mrb[0].mxu0
    %255 = vmatprep.mubr.f32.mxu0 0.0
    %256 = vmatmul.mubr.f32.gmra.mrb[0].mxu0 %v60
    %v257 = vpop.f32.mrb[0].mxu0
    %v258 = vadd.f32 0.0, %v257
    %v259 = vpop.f32.mrb[0].mxu0
    %260 = vdwg.mxu0
    %v261 = vadd.f32 %v53, %v176
    %v262 = vadd.f32 %v54, %v178
    %v263 = vadd.f32 %v55, %v253
    %v264 = vadd.f32 %v56, %v182
    %v265 = vadd.f32 %v57, %v184
    %v266 = vadd.f32 %v58, %v258
    %267 = vst [vmem:[#allocation2] sm:$0xff] %v261
    %268 = vst [vmem:[#allocation2 + $0x8] sm:$0xff] %v262
    %269 = vst [vmem:[#allocation2 + $0x10] sm:$0xff] %v263
    %270 = vst [vmem:[#allocation2 + $0x18] sm:$0xff] %v264
    %271 = vst [vmem:[#allocation2 + $0x20] sm:$0xff] %v265
    %272 = vst [vmem:[#allocation2 + $0x28] sm:$0xff] %v266
    // Predicated region
    $region26: #{tpu_custom_call.1} parent=1 // pred_check
      %p273 = pneg %p43
    $region27: #{tpu_custom_call.1} parent=1 // pred_check_branch
      %275 = sbr.rel (%p273) target = $region29
    $region28: #{tpu_custom_call.1} parent=1 // pred_region
      %v276 = vld [vmem:[#allocation2] sm:$0xff]
      %v277 = vld [vmem:[#allocation2 + $0x8] sm:$0xff]
      %v278 = vld [vmem:[#allocation2 + $0x10] sm:$0xff]
      %v279 = vld [vmem:[#allocation2 + $0x18] sm:$0xff]
      %v280 = vld [vmem:[#allocation2 + $0x20] sm:$0xff]
      %v281 = vld [vmem:[#allocation2 + $0x28] sm:$0xff]
      %v282 = vld [vmem:[%s2] sm:$0x7]
      %v284 = vlaneseq
      %v285 = vshrl.u32 %v284, 7
      %v286 = vsub.s32 0, %v285
      %v287 = vrot.slane %v282, %v286
      %v288 = vlaneseq
      %v289 = vshrl.u32 %v288, 7
      %v290 = vsub.s32 1, %v289
      %v291 = vrot.slane %v282, %v290
      %v292 = vlaneseq
      %v293 = vshrl.u32 %v292, 7
      %v294 = vsub.s32 2, %v293
      %v295 = vrot.slane %v282, %v294
      %v299 = vadd.f32 %v276, %v287
      %v300 = vadd.f32 %v277, %v291
      %v301 = vadd.f32 %v278, %v295
      %v302 = vadd.f32 %v279, %v287
      %v303 = vadd.f32 %v280, %v291
      %v304 = vadd.f32 %v281, %v295
      %305 = vst [vmem:[#allocation8] sm:$0xff] %v299
      %306 = vst [vmem:[#allocation8 + $0x8] sm:$0xff] %v300
      %307 = vst [vmem:[#allocation8 + $0x10] sm:$0xff] %v301
      %308 = vst [vmem:[#allocation8 + $0x18] sm:$0xff] %v302
      %309 = vst [vmem:[#allocation8 + $0x20] sm:$0xff] %v303
      %310 = vst [vmem:[#allocation8 + $0x28] sm:$0xff] %v304
    $region29: #{tpu_custom_call.1} parent=1 // pred_fallthru
      _
    // Predicated region
    $region30: #{tpu_custom_call.1} parent=1 // pred_check
      _
    $region31: #{tpu_custom_call.1} parent=1 // pred_check_branch
      %312 = sbr.rel (0) target = $region33
    $region32: #{tpu_custom_call.1} parent=1 // pred_region
      %s314 = ssub.s32 768, 768
      %315 = vsyncadd [#allocation5], %s314
      %s316 = sshll.u32 [#allocation8], 4
      %s317 = int_to_ptr.vmem [resolvable:$true] %s316
      %322 = dma.vmem_to_hbm [thread:$0]  %s317, 768, %s3, [#allocation5], 384, 384, 24
    $region33: #{tpu_custom_call.1} parent=1 // pred_fallthru
      _
    // Predicated region
    $region34: #{tpu_custom_call.1} parent=1 // pred_check
      _
    $region35: #{tpu_custom_call.1} parent=1 // pred_check_branch
      %324 = sbr.rel (0) target = $region37
    $region36: #{tpu_custom_call.1} parent=1 // pred_region
      %325 = dma.done [#allocation5], 768
    $region37: #{tpu_custom_call.1} parent=1 // pred_fallthru
      _
    %326 = vsyncpa [#allocation4], 1
    %327 = vsyncpa [#allocation7], 1
    %328 = vsyncpa [#allocation5], 1

</llo_original>
